<compile_context>
chip_gen: v6e
topology: v6e:2x2x1
jax: 0.10.0
libtpu: 0.0.40
codegen_flags: <defaults>
</compile_context>

<pallas_src>
import jax
import jax.numpy as jnp
from jax.experimental import pallas as pl
from jax.experimental.pallas import tpu as pltpu


def _normalize_kernel(x_ref, scale_ref, bias_ref, o_ref):
    # x_ref: (TR, TL); scale_ref / bias_ref: (TR, 1) f32 -> broadcast over lanes.
    x = x_ref[...].astype(jnp.float32)
    o_ref[...] = (x * scale_ref[...] + bias_ref[...]).astype(o_ref.dtype)


def _round_up(x, m):
    return ((x + m - 1) // m) * m


def _vmem_capacity_bytes():
    """Per-core VMEM capacity; conservative fallback if the query is unavailable."""
    try:
        return int(pltpu.get_tpu_info().vmem_capacity_bytes)
    except Exception:
        return 64 << 20  # v7x per-TensorCore size; safe lower bound everywhere


def _choose_tiles(rows, lanes, itemsize, target_bytes, sub_align):
    """Pick (TR, TL): TR multiple of sub_align or == rows; TL multiple of 128 or == lanes."""
    LANE = 128
    row_bytes = lanes * itemsize
    if row_bytes * sub_align <= target_bytes:
        # Full-width rows fit in the target: tile rows only.
        tl = lanes
        tr = target_bytes // row_bytes
        tr = rows if tr >= rows else max(sub_align, (tr // sub_align) * sub_align)
    else:
        # Even a minimal sublane-aligned strip of full rows is too big: tile lanes too.
        tr = sub_align if rows > sub_align else rows
        tl = target_bytes // (max(tr, 1) * itemsize)
        tl = lanes if tl >= lanes else max(LANE, (tl // LANE) * LANE)
    return tr, tl


def normalize(x, mean, std):
    """Pallas TPU implementation of Normalize.forward for NCHW input."""
    N, C, H, W = x.shape
    R, L = N * C, H * W
    itemsize = jnp.dtype(x.dtype).itemsize
    sub_align = max(8, 32 // itemsize)  # sublane packing: 8 f32, 16 bf16, 32 int8
    LANE = 128

    # Chip-aware budgets: request <= ~75% of VMEM and leave room for the
    # double-buffered in+out blocks plus compiler internal scratch.
    vmem_cap = _vmem_capacity_bytes()
    vmem_budget = (vmem_cap * 3) // 4
    target_bytes = min(16 << 20, max(1 << 20, (vmem_budget - (4 << 20)) // 4))

    TR, TL = _choose_tiles(R, L, itemsize, target_bytes, sub_align)
    grid_r, grid_l = pl.cdiv(R, TR), pl.cdiv(L, TL)

    # v7x has 2 TensorCores: make sure a multi-MiB problem yields >= 2 parallel
    # grid steps so both cores get work.
    total_bytes = R * L * itemsize
    while total_bytes > (4 << 20) and grid_r * grid_l < 2:
        if TR > sub_align:
            TR = max(sub_align, _round_up(TR // 2, sub_align))
        elif TL > LANE:
            TL = max(LANE, _round_up(TL // 2, LANE))
        else:
            break
        grid_r, grid_l = pl.cdiv(R, TR), pl.cdiv(L, TL)

    # Fold per-channel parameters into per-row affine coefficients (f32) and
    # pad them to grid_r * TR rows so every (TR, 1) block stays in-bounds.
    Rp = grid_r * TR
    scale_c = 1.0 / std.astype(jnp.float32)        # (C,)
    bias_c = -mean.astype(jnp.float32) * scale_c   # (C,)
    scale = jnp.tile(scale_c, N)                   # row r -> channel r % C
    bias = jnp.tile(bias_c, N)
    if Rp > R:
        scale = jnp.pad(scale, (0, Rp - R), constant_values=1.0)
        bias = jnp.pad(bias, (0, Rp - R), constant_values=0.0)
    scale = scale.reshape(Rp, 1)
    bias = bias.reshape(Rp, 1)

    # Lane-dense 2-D view of x (NCHW is contiguous, so this reshape is free).
    x2d = x.reshape(R, L)

    # VMEM: double-buffered in+out blocks + tiny (lane-padded) scale/bias blocks.
    block_bytes = TR * TL * itemsize
    param_block_bytes = _round_up(TR, 8) * LANE * 4
    vmem_needed = 2 * 2 * block_bytes + 2 * 2 * param_block_bytes + (2 << 20)
    vmem_limit = int(min(max(vmem_needed, 16 << 20), vmem_budget))

    out2d = pl.pallas_call(
        _normalize_kernel,
        out_shape=jax.ShapeDtypeStruct((R, L), x.dtype),
        grid_spec=pl.GridSpec(
            grid=(grid_r, grid_l),  # lane axis innermost -> scale/bias block idx rarely changes
            in_specs=[
                pl.BlockSpec((TR, TL), lambda i, j: (i, j)),  # x tile
                pl.BlockSpec((TR, 1), lambda i, j: (i, 0)),   # per-row scale
                pl.BlockSpec((TR, 1), lambda i, j: (i, 0)),   # per-row bias
            ],
            out_specs=pl.BlockSpec((TR, TL), lambda i, j: (i, j)),
        ),
        compiler_params=pltpu.CompilerParams(
            dimension_semantics=("parallel", "parallel"),
            vmem_limit_bytes=vmem_limit,
        ),
    )(x2d, scale, bias)

    return out2d.reshape(N, C, H, W)


def normalize_ref(x, mean, std):
    """Plain-JAX reference matching the PyTorch forward exactly."""
    m = mean.astype(x.dtype)[None, :, None, None]
    s = std.astype(x.dtype)[None, :, None, None]
    return (x - m) / s


if __name__ == "__main__":
    key = jax.random.PRNGKey(0)
    kx, km, ks, kx2 = jax.random.split(key, 4)

    # Main case: small NCHW f32 batch.
    N, C, H, W = 2, 4, 16, 16
    x = jax.random.normal(kx, (N, C, H, W), dtype=jnp.float32)
    mean = jax.random.normal(km, (C,), dtype=jnp.float32)
    std = jax.random.uniform(ks, (C,), dtype=jnp.float32, minval=0.5, maxval=1.5)

    out = jax.block_until_ready(normalize(x, mean, std))
    exp = normalize_ref(x, mean, std)
    assert out.shape == x.shape and out.dtype == x.dtype
    # x*(1/s) + (-m/s) differs from (x-m)/s by a few ULPs -> slightly looser tol.
    assert jnp.allclose(out, exp, atol=1e-5, rtol=1e-5)

    # Awkward shape: exercises full-extent (non-8/128-aligned) blocks & cdiv grids.
    xa = jax.random.normal(kx2, (1, 3, 5, 7), dtype=jnp.float32)
    mean3 = jnp.array([0.485, 0.456, 0.406], dtype=jnp.float32)
    std3 = jnp.array([0.229, 0.224, 0.225], dtype=jnp.float32)
    outa = jax.block_until_ready(normalize(xa, mean3, std3))
    assert jnp.allclose(outa, normalize_ref(xa, mean3, std3), atol=1e-5, rtol=1e-5)

    # bf16 input: exercises dtype-aware sublane alignment + f32 compute path.
    xb = x.astype(jnp.bfloat16)
    outb = jax.block_until_ready(normalize(xb, mean, std))
    assert outb.dtype == jnp.bfloat16
    exp_b = normalize_ref(xb.astype(jnp.float32), mean, std)
    assert jnp.allclose(outb.astype(jnp.float32), exp_b, atol=3e-2, rtol=2e-2)

    print("KERNEL_OK")
</pallas_src>

<mosaic_0001>
module attributes {stable_mosaic.version = 11 : i64} {
  func.func @_normalize_kernel(%arg0: i32, %arg1: i32, %arg2: memref<8x256xf32, #tpu.memory_space<vmem>>, %arg3: memref<8x1xf32, #tpu.memory_space<vmem>>, %arg4: memref<8x1xf32, #tpu.memory_space<vmem>>, %arg5: memref<8x256xf32, #tpu.memory_space<vmem>>) attributes {dimension_semantics = [#tpu.dimension_semantics<parallel>, #tpu.dimension_semantics<parallel>], iteration_bounds = array<i64: 1, 1>, scalar_prefetch = 0 : i64, scratch_operands = 0 : i64, tpu.core_type = #tpu.core_type<tc>, window_params = [{transform_indices = @transform_0, window_bounds = array<i64: 8, 256>}, {transform_indices = @transform_1, window_bounds = array<i64: 8, 1>}, {transform_indices = @transform_2, window_bounds = array<i64: 8, 1>}, {transform_indices = @transform_3, window_bounds = array<i64: 8, 256>}]} {
    %c0 = arith.constant 0 : index
    %c0_0 = arith.constant 0 : index
    %0 = vector.load %arg2[%c0, %c0_0] : memref<8x256xf32, #tpu.memory_space<vmem>>, vector<8x256xf32>
    %c0_1 = arith.constant 0 : index
    %c0_2 = arith.constant 0 : index
    %1 = vector.load %arg3[%c0_1, %c0_2] : memref<8x1xf32, #tpu.memory_space<vmem>>, vector<8x1xf32>
    %2 = vector.broadcast %1 : vector<8x1xf32> to vector<8x256xf32>
    %3 = arith.mulf %0, %2 : vector<8x256xf32>
    %c0_3 = arith.constant 0 : index
    %c0_4 = arith.constant 0 : index
    %4 = vector.load %arg4[%c0_3, %c0_4] : memref<8x1xf32, #tpu.memory_space<vmem>>, vector<8x1xf32>
    %5 = vector.broadcast %4 : vector<8x1xf32> to vector<8x256xf32>
    %6 = arith.addf %3, %5 : vector<8x256xf32>
    %c0_5 = arith.constant 0 : index
    %c0_6 = arith.constant 0 : index
    %7 = vector.load %arg5[%c0_5, %c0_6] : memref<8x256xf32, #tpu.memory_space<vmem>>, vector<8x256xf32>
    tpu.vector_store %arg5[%c0_5, %c0_6], %6 {strides = array<i32>} : memref<8x256xf32, #tpu.memory_space<vmem>>, vector<8x256xf32>,
    return
  }
  func.func @transform_0(%arg0: i32, %arg1: i32) -> (i32, i32) {
    %c0_i32 = arith.constant 0 : i32
    return %arg0, %arg1 : i32, i32
  }
  func.func @transform_1(%arg0: i32, %arg1: i32) -> (i32, i32) {
    %c0_i32 = arith.constant 0 : i32
    %c0_i32_0 = arith.constant 0 : i32
    return %arg0, %c0_i32 : i32, i32
  }
  func.func @transform_2(%arg0: i32, %arg1: i32) -> (i32, i32) {
    %c0_i32 = arith.constant 0 : i32
    %c0_i32_0 = arith.constant 0 : i32
    return %arg0, %c0_i32 : i32, i32
  }
  func.func @transform_3(%arg0: i32, %arg1: i32) -> (i32, i32) {
    %c0_i32 = arith.constant 0 : i32
    return %arg0, %arg1 : i32, i32
  }
}

</mosaic_0001>

<llo_original>
// kernel: tpu_custom_call.1
$region0: #{tpu_custom_call.1}
  #allocation0 [shape = 'u32[]', space=smem, size = 0x4, offset = 0x4, fixed_abs, tag = 'smem constant byte address 0x4 - core index']
  #allocation1 [shape = 'u32[144,128]{1,0:T(1,128)}', space=vmem, size = 0x12000, scoped, tag = 'internal scratch']
  %s0 = inlined_call_operand.vmem [shape: f32[8,256], index: 0, kind: input, shape index: {}]
  %s1 = inlined_call_operand.vmem [shape: f32[8,1], index: 1, kind: input, shape index: {}]
  %s2 = inlined_call_operand.vmem [shape: f32[8,1], index: 2, kind: input, shape index: {}]
  %s3 = inlined_call_operand.hbm [shape: f32[8,256], index: 3, kind: output, shape index: {}]
  %s4 = sld [smem:[#allocation0]]
  $region22: #{tpu_custom_call.1} parent=0
    _
  %s6 = ssub.s32 1, %s4
  %s7 = scalar_select 0, %s6, %s4
  $region1: #{tpu_custom_call.1} parent=0
    #allocation2 [shape = 'u8[8192]{0}', space=vmem, size = 0x2000, scoped, tag = 'output window, operand 0, single buffered']
    #allocation3 [shape = 's32[1]{0}', space=sflag, size = 0x4, scoped, tag = 'scoped memory for tpu_custom_call.1']
    %8 = vsyncpa [#allocation3], 0
    // Predicated region
    $region2: #{tpu_custom_call.1} parent=1 // pred_check
      _
    $region3: #{tpu_custom_call.1} parent=1 // pred_check_branch
      %10 = sbr.rel (0) target = $region5
    $region4: #{tpu_custom_call.1} parent=1 // pred_region
      _
    $region5: #{tpu_custom_call.1} parent=1 // pred_fallthru
      _
    // Predicated region
    $region6: #{tpu_custom_call.1} parent=1 // pred_check
      _
    $region7: #{tpu_custom_call.1} parent=1 // pred_check_branch
      %12 = sbr.rel (0) target = $region9
    $region8: #{tpu_custom_call.1} parent=1 // pred_region
      _
    $region9: #{tpu_custom_call.1} parent=1 // pred_fallthru
      _
    // Predicated region
    $region10: #{tpu_custom_call.1} parent=1 // pred_check
      _
    $region11: #{tpu_custom_call.1} parent=1 // pred_check_branch
      %14 = sbr.rel (0) target = $region13
    $region12: #{tpu_custom_call.1} parent=1 // pred_region
      _
    $region13: #{tpu_custom_call.1} parent=1 // pred_fallthru
      _
    %v15 = vld [vmem:[%s0] sm:$0xff]
    %v16 = vld [vmem:[%s0 + $0x8] sm:$0xff]
    %v17 = vld [vmem:[%s1] sm:$0xff]
    %19 = vset.pattern.permute.xlu0 0
    %20 = vperm.xlu0 %19, %v17
    %v21 = vpop.permute.xlu0 %20
    %v23 = vmul.f32 %v15, %v21
    %v24 = vmul.f32 %v16, %v21
    %v25 = vld [vmem:[%s2] sm:$0xff]
    %27 = vset.pattern.permute.xlu0 0
    %28 = vperm.xlu0 %27, %v25
    %v29 = vpop.permute.xlu0 %28
    %v31 = vadd.f32 %v23, %v29
    %v32 = vadd.f32 %v24, %v29
    %33 = vst [vmem:[#allocation2] sm:$0xff] %v31
    %34 = vst [vmem:[#allocation2 + $0x8] sm:$0xff] %v32
    // Predicated region
    $region14: #{tpu_custom_call.1} parent=1 // pred_check
      _
    $region15: #{tpu_custom_call.1} parent=1 // pred_check_branch
      %36 = sbr.rel (0) target = $region17
    $region16: #{tpu_custom_call.1} parent=1 // pred_region
      %s38 = ssub.s32 256, 256
      %39 = vsyncadd [#allocation3], %s38
      %s41 = sshll.u32 [#allocation2], 4
      %s42 = int_to_ptr.vmem [resolvable:$true] %s41
      %44 = dma.vmem_to_hbm [thread:$0]  %s42, 256, %s3, [#allocation3]
    $region17: #{tpu_custom_call.1} parent=1 // pred_fallthru
      _
    // Predicated region
    $region18: #{tpu_custom_call.1} parent=1 // pred_check
      _
    $region19: #{tpu_custom_call.1} parent=1 // pred_check_branch
      %46 = sbr.rel (0) target = $region21
    $region20: #{tpu_custom_call.1} parent=1 // pred_region
      %47 = dma.done [#allocation3], 256
    $region21: #{tpu_custom_call.1} parent=1 // pred_fallthru
      _
    %48 = vsyncpa [#allocation3], 1

</llo_original>
